<compile_context>
chip_gen: v7x
topology: tpu7x:2x2x1
jax: 0.10.0
libtpu: 0.0.40
codegen_flags: <defaults>
</compile_context>

<pallas_src>
import jax
import jax.numpy as jnp
from jax.experimental import pallas as pl
from jax.experimental.pallas import tpu as pltpu

_BN_EPS = 1e-5
_INV_SQRT2 = 0.7071067811865476


def conv_stats_kernel(x_ref, w_ref, y_ref, stats_ref):
    """Conv1d(k=3, pad=1) for one batch + per-batch BN partial stats.

    x_ref    : (1, Cin, P)    bf16, position on lanes
    w_ref    : (3*Cout, Cin)  bf16, stacked taps [w_k0; w_k1; w_k2]
    y_ref    : (1, Cout, P)   f32 conv output (bias-free; BN cancels the bias)
    stats_ref: (1, Cout, 2)   f32, [:, 0] = sum_p y, [:, 1] = sum_p y^2
    """
    cout, p = y_ref.shape[1], y_ref.shape[2]

    x = x_ref[0]                                    # (Cin, P)     bf16
    w = w_ref[...]                                  # (3*Cout, Cin) bf16

    # One MXU contraction for all three taps (f32 accumulate).
    s = jnp.dot(w, x, preferred_element_type=jnp.float32)       # (3*Cout, P)
    s0 = s[:cout]              # s0[:, t] = w_k0 . x[:, t]  -> needed at position t+1
    s1 = s[cout:2 * cout]      # s1[:, t] = w_k1 . x[:, t]  -> needed at position t
    s2 = s[2 * cout:]          # s2[:, t] = w_k2 . x[:, t]  -> needed at position t-1

    # Shift the small per-tap outputs along the lane axis on the XLU:
    #   roll(s0, +1)[:, t]  == s0[:, t-1]
    #   roll(s2, P-1)[:, t] == s2[:, t+1]
    s0_sh = pltpu.roll(s0, shift=1, axis=1)
    s2_sh = pltpu.roll(s2, shift=p - 1, axis=1)

    # Conv zero-padding at the sequence ends: zero exactly the wrapped columns
    # with a (1, P) multiplicative lane mask (one vmul per tap).
    lane = jax.lax.broadcasted_iota(jnp.int32, (1, p), 1)
    left_ok = (lane > 0).astype(jnp.float32)          # position 0 has no t-1
    right_ok = (lane < p - 1).astype(jnp.float32)     # position P-1 has no t+1

    y = s1 + s0_sh * left_ok + s2_sh * right_ok       # (Cout, P) f32
    y_ref[0] = y

    # One-pass per-batch partial statistics (reduced across batches in XLA so
    # the batch grid axis stays "parallel").
    stats_ref[0] = jnp.concatenate(
        [jnp.sum(y, axis=1, keepdims=True),
         jnp.sum(y * y, axis=1, keepdims=True)], axis=1)         # (Cout, 2)


def bn_gelu_kernel(y_ref, ab_ref, out_ref):
    """Folded BatchNorm (one FMA/elem) + exact erf GELU for one batch.

    y_ref  : (1, Cout, P) f32
    ab_ref : (Cout, 2)    f32, column 0 = scale, column 1 = shift
    out_ref: (1, Cout, P) f32
    """
    y = y_ref[0]
    scale = ab_ref[:, 0:1]                          # (Cout, 1)
    shift = ab_ref[:, 1:2]                          # (Cout, 1)
    z = y * scale + shift
    out_ref[0] = 0.5 * z * (1.0 + jax.lax.erf(z * jnp.float32(_INV_SQRT2)))


def agg0_forward(x, conv_w, conv_b, bn_gamma, bn_beta):
    """x: (B, 3*seg_dim, P) f32; conv_w: (seg_dim, 3*seg_dim, 3). Returns (B, P, seg_dim).

    conv_b is accepted for interface parity with the PyTorch module but is not
    used: under training-mode BatchNorm the per-channel mean subtraction cancels
    the conv bias exactly (verified against the reference below).
    """
    del conv_b
    B, cin, P = x.shape
    cout = conv_w.shape[0]

    # bf16 MXU inputs (halves input HBM/DMA bytes; f32 accumulation in-kernel).
    x_bf = x.astype(jnp.bfloat16)                                       # (B, Cin, P)
    w_stacked = (jnp.transpose(conv_w, (2, 0, 1))                       # (3, Cout, Cin)
                 .reshape(3 * cout, cin).astype(jnp.bfloat16))          # [w0; w1; w2]

    parallel = pltpu.CompilerParams(dimension_semantics=("parallel",))

    # ---- Pass 1: conv + per-batch partial BN statistics ----------------------
    y, stats = pl.pallas_call(
        conv_stats_kernel,
        grid=(B,),
        in_specs=[
            pl.BlockSpec((1, cin, P), lambda b: (b, 0, 0)),    # x read in place
            pl.BlockSpec((3 * cout, cin), lambda b: (0, 0)),   # weights, resident
        ],
        out_specs=[
            pl.BlockSpec((1, cout, P), lambda b: (b, 0, 0)),
            pl.BlockSpec((1, cout, 2), lambda b: (b, 0, 0)),
        ],
        out_shape=[
            jax.ShapeDtypeStruct((B, cout, P), jnp.float32),
            jax.ShapeDtypeStruct((B, cout, 2), jnp.float32),
        ],
        compiler_params=parallel,
    )(x_bf, w_stacked)

    # ---- Tiny cross-batch reduction + BN folding (XLA; O(Cout) work) ---------
    n = jnp.float32(B * P)
    total = jnp.sum(stats, axis=0)                       # (Cout, 2)
    mean = total[:, 0] / n
    var = total[:, 1] / n - mean * mean                  # biased (training-mode BN)
    scale = bn_gamma * jax.lax.rsqrt(var + _BN_EPS)
    shift = bn_beta - mean * scale
    ab = jnp.stack([scale, shift], axis=1)               # (Cout, 2)

    # ---- Pass 2: folded BN + exact GELU ---------------------------------------
    out = pl.pallas_call(
        bn_gelu_kernel,
        grid=(B,),
        in_specs=[
            pl.BlockSpec((1, cout, P), lambda b: (b, 0, 0)),
            pl.BlockSpec((cout, 2), lambda b: (0, 0)),
        ],
        out_specs=pl.BlockSpec((1, cout, P), lambda b: (b, 0, 0)),
        out_shape=jax.ShapeDtypeStruct((B, cout, P), jnp.float32),
        compiler_params=parallel,
    )(y, ab)

    # permute(0, 2, 1): done by XLA where it can fuse with the consumer.
    return jnp.transpose(out, (0, 2, 1))                 # (B, P, Cout)


def agg0_reference(x, conv_w, conv_b, bn_gamma, bn_beta):
    """Plain-JAX reference (includes the conv bias) for validation."""
    y = jax.lax.conv_general_dilated(
        x, conv_w, window_strides=(1,), padding=((1, 1),),
        dimension_numbers=("NCH", "OIH", "NCH"),
        precision=jax.lax.Precision.HIGHEST)
    y = y + conv_b[None, :, None]
    mean = jnp.mean(y, axis=(0, 2), keepdims=True)
    var = jnp.mean((y - mean) ** 2, axis=(0, 2), keepdims=True)
    y = (y - mean) / jnp.sqrt(var + _BN_EPS)
    y = y * bn_gamma[None, :, None] + bn_beta[None, :, None]
    y = 0.5 * y * (1.0 + jax.lax.erf(y * _INV_SQRT2))
    return jnp.transpose(y, (0, 2, 1))


if __name__ == "__main__":
    seg_dim = 32
    B, P = 2, 16
    cin, cout = 3 * seg_dim, seg_dim

    key = jax.random.PRNGKey(0)
    kx, kw, kb, kg, kbeta = jax.random.split(key, 5)
    x = jax.random.normal(kx, (B, cin, P), dtype=jnp.float32)
    conv_w = 0.02 * jax.random.normal(kw, (cout, cin, 3), dtype=jnp.float32)
    conv_b = 0.02 * jax.random.normal(kb, (cout,), dtype=jnp.float32)
    bn_gamma = 1.0 + 0.1 * jax.random.normal(kg, (cout,), dtype=jnp.float32)
    bn_beta = 0.1 * jax.random.normal(kbeta, (cout,), dtype=jnp.float32)

    fwd = jax.jit(agg0_forward)
    out = jax.block_until_ready(fwd(x, conv_w, conv_b, bn_gamma, bn_beta))
    assert out.shape == (B, P, cout), out.shape

    # Tight check: reference computed from the same bf16-rounded conv inputs,
    # isolating the kernel's conv/BN/GELU logic from the bf16 MXU quantization.
    x_q = x.astype(jnp.bfloat16).astype(jnp.float32)
    w_q = conv_w.astype(jnp.bfloat16).astype(jnp.float32)
    ref_tight = agg0_reference(x_q, w_q, conv_b, bn_gamma, bn_beta)
    err_tight = float(jnp.abs(out - ref_tight).max())
    assert jnp.allclose(out, ref_tight, atol=2e-4, rtol=2e-4), err_tight

    # Loose sanity check against the exact f32 reference (bounds bf16 deviation).
    ref_f32 = agg0_reference(x, conv_w, conv_b, bn_gamma, bn_beta)
    err_f32 = float(jnp.abs(out - ref_f32).max())
    assert jnp.allclose(out, ref_f32, atol=5e-2, rtol=5e-2), err_f32

    print("KERNEL_OK")
</pallas_src>

<mosaic_0001>
module attributes {stable_mosaic.version = 11 : i64} {
  func.func @conv_stats_kernel(%arg0: i32, %arg1: memref<1x96x16xbf16, #tpu.memory_space<vmem>>, %arg2: memref<96x96xbf16, #tpu.memory_space<vmem>>, %arg3: memref<1x32x16xf32, #tpu.memory_space<vmem>>, %arg4: memref<1x32x2xf32, #tpu.memory_space<vmem>>) attributes {dimension_semantics = [#tpu.dimension_semantics<parallel>], iteration_bounds = array<i64: 2>, scalar_prefetch = 0 : i64, scratch_operands = 0 : i64, tpu.core_type = #tpu.core_type<tc>, window_params = [{transform_indices = @transform_0, window_bounds = array<i64: 1, 96, 16>}, {pipeline_mode = #tpu.pipeline_mode<synchronous>, transform_indices = @transform_1, window_bounds = array<i64: 96, 96>}, {transform_indices = @transform_2, window_bounds = array<i64: 1, 32, 16>}, {transform_indices = @transform_3, window_bounds = array<i64: 1, 32, 2>}]} {
    %c0 = arith.constant 0 : index
    %c0_0 = arith.constant 0 : index
    %c0_1 = arith.constant 0 : index
    %0 = vector.load %arg1[%c0, %c0_0, %c0_1] : memref<1x96x16xbf16, #tpu.memory_space<vmem>>, vector<1x96x16xbf16>
    %1 = vector.shape_cast %0 : vector<1x96x16xbf16> to vector<96x16xbf16>
    %c0_2 = arith.constant 0 : index
    %c0_3 = arith.constant 0 : index
    %2 = vector.load %arg2[%c0_2, %c0_3] : memref<96x96xbf16, #tpu.memory_space<vmem>>, vector<96x96xbf16>
    %cst = arith.constant dense<0.000000e+00> : vector<96x16xf32>
    %3 = tpu.matmul %2, %1, %cst {dimension_numbers = #tpu.dot_dimension_numbers<[1], [0], [0], [1], [0, 0, 1, 1], [], []>} : vector<96x96xbf16>, vector<96x16xbf16>, vector<96x16xf32> -> vector<96x16xf32>
    %4 = vector.extract_strided_slice %3 {offsets = [0, 0], sizes = [32, 16], strides = [1, 1]} : vector<96x16xf32> to vector<32x16xf32>
    %5 = vector.extract_strided_slice %3 {offsets = [32, 0], sizes = [32, 16], strides = [1, 1]} : vector<96x16xf32> to vector<32x16xf32>
    %6 = vector.extract_strided_slice %3 {offsets = [64, 0], sizes = [32, 16], strides = [1, 1]} : vector<96x16xf32> to vector<32x16xf32>
    %c1_i32 = arith.constant 1 : i32
    %7 = tpu.dynamic_rotate %4 by %c1_i32 dim 1 : vector<32x16xf32>, i32 -> vector<32x16xf32>
    %c15_i32 = arith.constant 15 : i32
    %8 = tpu.dynamic_rotate %6 by %c15_i32 dim 1 : vector<32x16xf32>, i32 -> vector<32x16xf32>
    %9 = tpu.iota {dimensions = array<i32: 1>} : vector<1x16xi32>
    %c0_i32 = arith.constant 0 : i32
    %10 = vector.broadcast %c0_i32 : i32 to vector<1x16xi32>
    %11 = arith.cmpi sgt, %9, %10 : vector<1x16xi32>
    %12 = arith.extui %11 : vector<1x16xi1> to vector<1x16xi32>
    %13 = arith.sitofp %12 : vector<1x16xi32> to vector<1x16xf32>
    %c15_i32_4 = arith.constant 15 : i32
    %14 = vector.broadcast %c15_i32_4 : i32 to vector<1x16xi32>
    %15 = arith.cmpi slt, %9, %14 : vector<1x16xi32>
    %16 = arith.extui %15 : vector<1x16xi1> to vector<1x16xi32>
    %17 = arith.sitofp %16 : vector<1x16xi32> to vector<1x16xf32>
    %18 = vector.broadcast %13 : vector<1x16xf32> to vector<32x16xf32>
    %19 = arith.mulf %7, %18 : vector<32x16xf32>
    %20 = arith.addf %5, %19 : vector<32x16xf32>
    %21 = vector.broadcast %17 : vector<1x16xf32> to vector<32x16xf32>
    %22 = arith.mulf %8, %21 : vector<32x16xf32>
    %23 = arith.addf %20, %22 : vector<32x16xf32>
    %c0_5 = arith.constant 0 : index
    %c0_6 = arith.constant 0 : index
    %c0_7 = arith.constant 0 : index
    %24 = vector.load %arg3[%c0_5, %c0_6, %c0_7] : memref<1x32x16xf32, #tpu.memory_space<vmem>>, vector<1x32x16xf32>
    %25 = vector.shape_cast %24 : vector<1x32x16xf32> to vector<32x16xf32>
    %26 = vector.shape_cast %23 : vector<32x16xf32> to vector<1x32x16xf32>
    tpu.vector_store %arg3[%c0_5, %c0_6, %c0_7], %26 {strides = array<i32>} : memref<1x32x16xf32, #tpu.memory_space<vmem>>, vector<1x32x16xf32>,
    %cst_8 = arith.constant dense<0.000000e+00> : vector<32xf32>
    %27 = vector.multi_reduction <add>, %23, %cst_8 [1] : vector<32x16xf32> to vector<32xf32>
    %28 = vector.shape_cast %27 : vector<32xf32> to vector<32x1xf32>
    %29 = arith.mulf %23, %23 : vector<32x16xf32>
    %cst_9 = arith.constant dense<0.000000e+00> : vector<32xf32>
    %30 = vector.multi_reduction <add>, %29, %cst_9 [1] : vector<32x16xf32> to vector<32xf32>
    %31 = vector.shape_cast %30 : vector<32xf32> to vector<32x1xf32>
    %32 = tpu.concatenate %28, %31 in 1 : vector<32x1xf32>, vector<32x1xf32> -> vector<32x2xf32>
    %c0_10 = arith.constant 0 : index
    %c0_11 = arith.constant 0 : index
    %c0_12 = arith.constant 0 : index
    %33 = vector.load %arg4[%c0_10, %c0_11, %c0_12] : memref<1x32x2xf32, #tpu.memory_space<vmem>>, vector<1x32x2xf32>
    %34 = vector.shape_cast %33 : vector<1x32x2xf32> to vector<32x2xf32>
    %35 = vector.shape_cast %32 : vector<32x2xf32> to vector<1x32x2xf32>
    tpu.vector_store %arg4[%c0_10, %c0_11, %c0_12], %35 {strides = array<i32>} : memref<1x32x2xf32, #tpu.memory_space<vmem>>, vector<1x32x2xf32>,
    return
  }
  func.func @transform_0(%arg0: i32) -> (i32, i32, i32) {
    %c0_i32 = arith.constant 0 : i32
    %c0_i32_0 = arith.constant 0 : i32
    %c0_i32_1 = arith.constant 0 : i32
    return %arg0, %c0_i32, %c0_i32_0 : i32, i32, i32
  }
  func.func @transform_1(%arg0: i32) -> (i32, i32) {
    %c0_i32 = arith.constant 0 : i32
    %c0_i32_0 = arith.constant 0 : i32
    %c0_i32_1 = arith.constant 0 : i32
    return %c0_i32, %c0_i32_0 : i32, i32
  }
  func.func @transform_2(%arg0: i32) -> (i32, i32, i32) {
    %c0_i32 = arith.constant 0 : i32
    %c0_i32_0 = arith.constant 0 : i32
    %c0_i32_1 = arith.constant 0 : i32
    return %arg0, %c0_i32, %c0_i32_0 : i32, i32, i32
  }
  func.func @transform_3(%arg0: i32) -> (i32, i32, i32) {
    %c0_i32 = arith.constant 0 : i32
    %c0_i32_0 = arith.constant 0 : i32
    %c0_i32_1 = arith.constant 0 : i32
    return %arg0, %c0_i32, %c0_i32_0 : i32, i32, i32
  }
}

module attributes {stable_mosaic.version = 11 : i64} {
  func.func @bn_gelu_kernel(%arg0: i32, %arg1: memref<1x32x16xf32, #tpu.memory_space<vmem>>, %arg2: memref<32x2xf32, #tpu.memory_space<vmem>>, %arg3: memref<1x32x16xf32, #tpu.memory_space<vmem>>) attributes {dimension_semantics = [#tpu.dimension_semantics<parallel>], iteration_bounds = array<i64: 2>, scalar_prefetch = 0 : i64, scratch_operands = 0 : i64, tpu.core_type = #tpu.core_type<tc>, window_params = [{transform_indices = @transform_0, window_bounds = array<i64: 1, 32, 16>}, {pipeline_mode = #tpu.pipeline_mode<synchronous>, transform_indices = @transform_1, window_bounds = array<i64: 32, 2>}, {transform_indices = @transform_2, window_bounds = array<i64: 1, 32, 16>}]} {
    %c0 = arith.constant 0 : index
    %c0_0 = arith.constant 0 : index
    %c0_1 = arith.constant 0 : index
    %0 = vector.load %arg1[%c0, %c0_0, %c0_1] : memref<1x32x16xf32, #tpu.memory_space<vmem>>, vector<1x32x16xf32>
    %1 = vector.shape_cast %0 : vector<1x32x16xf32> to vector<32x16xf32>
    %c0_2 = arith.constant 0 : index
    %c0_3 = arith.constant 0 : index
    %2 = vector.load %arg2[%c0_2, %c0_3] : memref<32x2xf32, #tpu.memory_space<vmem>>, vector<32x1xf32>
    %c0_4 = arith.constant 0 : index
    %c1 = arith.constant 1 : index
    %3 = vector.load %arg2[%c0_4, %c1] : memref<32x2xf32, #tpu.memory_space<vmem>>, vector<32x1xf32>
    %4 = vector.broadcast %2 : vector<32x1xf32> to vector<32x16xf32>
    %5 = arith.mulf %1, %4 : vector<32x16xf32>
    %6 = vector.broadcast %3 : vector<32x1xf32> to vector<32x16xf32>
    %7 = arith.addf %5, %6 : vector<32x16xf32>
    %cst = arith.constant 5.000000e-01 : f32
    %8 = vector.broadcast %cst : f32 to vector<32x16xf32>
    %9 = arith.mulf %8, %7 : vector<32x16xf32>
    %cst_5 = arith.constant 0.707106769 : f32
    %10 = vector.broadcast %cst_5 : f32 to vector<32x16xf32>
    %11 = arith.mulf %7, %10 : vector<32x16xf32>
    %12 = math.erf %11 : vector<32x16xf32>
    %cst_6 = arith.constant 1.000000e+00 : f32
    %13 = vector.broadcast %cst_6 : f32 to vector<32x16xf32>
    %14 = arith.addf %13, %12 : vector<32x16xf32>
    %15 = arith.mulf %9, %14 : vector<32x16xf32>
    %c0_7 = arith.constant 0 : index
    %c0_8 = arith.constant 0 : index
    %c0_9 = arith.constant 0 : index
    %16 = vector.load %arg3[%c0_7, %c0_8, %c0_9] : memref<1x32x16xf32, #tpu.memory_space<vmem>>, vector<1x32x16xf32>
    %17 = vector.shape_cast %16 : vector<1x32x16xf32> to vector<32x16xf32>
    %18 = vector.shape_cast %15 : vector<32x16xf32> to vector<1x32x16xf32>
    tpu.vector_store %arg3[%c0_7, %c0_8, %c0_9], %18 {strides = array<i32>} : memref<1x32x16xf32, #tpu.memory_space<vmem>>, vector<1x32x16xf32>,
    return
  }
  func.func @transform_0(%arg0: i32) -> (i32, i32, i32) {
    %c0_i32 = arith.constant 0 : i32
    %c0_i32_0 = arith.constant 0 : i32
    %c0_i32_1 = arith.constant 0 : i32
    return %arg0, %c0_i32, %c0_i32_0 : i32, i32, i32
  }
  func.func @transform_1(%arg0: i32) -> (i32, i32) {
    %c0_i32 = arith.constant 0 : i32
    %c0_i32_0 = arith.constant 0 : i32
    %c0_i32_1 = arith.constant 0 : i32
    return %c0_i32, %c0_i32_0 : i32, i32
  }
  func.func @transform_2(%arg0: i32) -> (i32, i32, i32) {
    %c0_i32 = arith.constant 0 : i32
    %c0_i32_0 = arith.constant 0 : i32
    %c0_i32_1 = arith.constant 0 : i32
    return %arg0, %c0_i32, %c0_i32_0 : i32, i32, i32
  }
}

</mosaic_0001>

<llo_original>
// kernel: agg0_forward.3
$region0: #{agg0_forward.3}
  #allocation0 [shape = 'u32[]', space=smem, size = 0x4, offset = 0x4, fixed_abs, tag = 'smem constant byte address 0x4 - core index']
  #allocation1 [shape = 'u32[144,128]{1,0:T(1,128)}', space=vmem, size = 0x12000, scoped, tag = 'internal scratch']
  %s0 = inlined_call_operand.vmem [shape: f32[2,32,16], index: 0, kind: input, shape index: {}]
  %s1 = inlined_call_operand.vmem [shape: f32[32,2], index: 1, kind: input, shape index: {}]
  %s2 = inlined_call_operand.vmem [shape: f32[2,32,16], index: 2, kind: output, shape index: {}]
  %s3 = sld [smem:[#allocation0]]
  $region41: #{agg0_forward.3} parent=0
    _
  %s5 = ssub.s32 1, %s3
  %s6 = scalar_select 0, %s5, %s3
  loop: start=0, step=1, limit=4
  $region2: #{agg0_forward.3} parent=0 // loop_pre_header
    _
  $region3: #{agg0_forward.3} parent=0 // loop_header
    %s8 = sphi 0, %s12
    %p9 = scmp.ge.s32.totalorder %s8, 4
    %s18 = sphi 0, %s20
    %s21 = sphi 0, %s18
    %s22 = sphi 0, %s21
    %s38 = sphi 0, %s22
    %s42 = sphi 0, %s42
    %s44 = sphi 0, %s42
    %s45 = sphi 0, %s44
    %s59 = sphi 0, %s45
    %s65 = sphi 0, %s67
    %s68 = sphi 0, %s65
    %s69 = sphi 0, %s68
    %s85 = sphi 0, %s69
  $region4: #{agg0_forward.3} parent=0 // loop_header_branch
    %11 = sbr.rel (%p9) target = $region8
  $region5: #{agg0_forward.3} parent=0 // loop_body
    %s13 = ssub.s32 %s8, 1
    %s14 = ssub.s32 %s8, 2
    %s15 = sadd.s32 %s8, 1
    %s16 = ssub.s32 %s8, %s15
    %p17 = scmp.eq.s32.totalorder %s16, 0
    %s19 = sadd.s32 %s18, 1
    %s20 = scalar_select %p17, %s18, %s19
    %p23 = pneg %p17
    %p24 = scmp.eq.s32.totalorder %s8, 1
    %p25 = por %p23, %p24
    %p26 = scmp.ne.s32.totalorder %s18, %s21
    %p27 = scmp.eq.s32.totalorder %s8, 0
    %p28 = por %p26, %p27
    %p29 = scmp.ne.s32.totalorder %s18, %s21
    %p30 = scmp.eq.s32.totalorder %s13, 1
    %p31 = por %p29, %p30
    %p32 = scmp.ne.s32.totalorder %s21, %s22
    %p33 = scmp.eq.s32.totalorder %s13, 0
    %p34 = por %p32, %p33
    %p35 = scmp.ne.s32.totalorder %s21, %s22
    %p36 = scmp.eq.s32.totalorder %s14, 1
    %p37 = por %p35, %p36
    %p39 = scmp.ne.s32.totalorder %s22, %s38
    %p40 = scmp.eq.s32.totalorder %s14, 0
    %p41 = por %p39, %p40
    %s43 = sadd.s32 %s42, 1
    %p46 = scmp.eq.s32.totalorder %s8, 1
    %p47 = scmp.ne.s32.totalorder %s42, %s44
    %p48 = scmp.eq.s32.totalorder %s8, 0
    %p49 = por %p47, %p48
    %p50 = scmp.ne.s32.totalorder %s42, %s44
    %p51 = scmp.eq.s32.totalorder %s13, 1
    %p52 = por %p50, %p51
    %p53 = scmp.ne.s32.totalorder %s44, %s45
    %p54 = scmp.eq.s32.totalorder %s13, 0
    %p55 = por %p53, %p54
    %p56 = scmp.ne.s32.totalorder %s44, %s45
    %p57 = scmp.eq.s32.totalorder %s14, 1
    %p58 = por %p56, %p57
    %p60 = scmp.ne.s32.totalorder %s45, %s59
    %p61 = scmp.eq.s32.totalorder %s14, 0
    %p62 = por %p60, %p61
    %s63 = ssub.s32 %s8, %s15
    %p64 = scmp.eq.s32.totalorder %s63, 0
    %s66 = sadd.s32 %s65, 1
    %s67 = scalar_select %p64, %s65, %s66
    %p70 = pneg %p64
    %p71 = scmp.eq.s32.totalorder %s8, 1
    %p72 = por %p70, %p71
    %p73 = scmp.ne.s32.totalorder %s65, %s68
    %p74 = scmp.eq.s32.totalorder %s8, 0
    %p75 = por %p73, %p74
    %p76 = scmp.ne.s32.totalorder %s65, %s68
    %p77 = scmp.eq.s32.totalorder %s13, 1
    %p78 = por %p76, %p77
    %p79 = scmp.ne.s32.totalorder %s68, %s69
    %p80 = scmp.eq.s32.totalorder %s13, 0
    %p81 = por %p79, %p80
    %p82 = scmp.ne.s32.totalorder %s68, %s69
    %p83 = scmp.eq.s32.totalorder %s14, 1
    %p84 = por %p82, %p83
    %p86 = scmp.ne.s32.totalorder %s69, %s85
    %p87 = scmp.eq.s32.totalorder %s14, 0
    %p88 = por %p86, %p87
    %p89 = scmp.le.s32.totalorder 1, %s8
    %p90 = scmp.lt.s32.totalorder %s8, 3
    %p91 = pnand %p89, %p90
    %p92 = pneg %p91
    // Predicated region
    $region9: #{agg0_forward.3} parent=5 // pred_check
      _
    $region10: #{agg0_forward.3} parent=5 // pred_check_branch
      %94 = sbr.rel (%p91) target = $region12
    $region11: #{agg0_forward.3} parent=5 // pred_region
      %s95 = ssub.s32 %s8, 1
      // Predicated region
      $region13: #{agg0_forward.3} parent=11 // pred_check
        %p96 = pneg %p55
      $region14: #{agg0_forward.3} parent=11 // pred_check_branch
        %98 = sbr.rel (%p96) target = $region16
      $region15: #{agg0_forward.3} parent=11 // pred_region
        _
      $region16: #{agg0_forward.3} parent=11 // pred_fallthru
        _
    $region12: #{agg0_forward.3} parent=5 // pred_fallthru
      _
    %p99 = scmp.lt.s32.totalorder %s8, 2
    // Predicated region
    $region17: #{agg0_forward.3} parent=5 // pred_check
      %p100 = pneg %p99
    $region18: #{agg0_forward.3} parent=5 // pred_check_branch
      %102 = sbr.rel (%p100) target = $region20
    $region19: #{agg0_forward.3} parent=5 // pred_region
      // Predicated region
      $region21: #{agg0_forward.3} parent=19 // pred_check
        %p103 = pneg %p28
      $region22: #{agg0_forward.3} parent=19 // pred_check_branch
        %105 = sbr.rel (%p103) target = $region24
      $region23: #{agg0_forward.3} parent=19 // pred_region
        %p106 = scmp.lt.s32.totalorder %s8, 1
        %s107 = scalar_select %p106, %s8, 1
        %s108 = smul.addr %s107, 4
        %s109 = smul.addr %s108, 8
        %s110 = scalar_lea.vmem %s0, %s109
      $region24: #{agg0_forward.3} parent=19 // pred_fallthru
        _
    $region20: #{agg0_forward.3} parent=5 // pred_fallthru
      _
    %p111 = scmp.le.s32.totalorder 1, %s8
    %p112 = scmp.lt.s32.totalorder %s8, 3
    %p113 = pnand %p111, %p112
    %p114 = pneg %p113
    // Predicated region
    $region25: #{agg0_forward.3} parent=5 // pred_check
      _
    $region26: #{agg0_forward.3} parent=5 // pred_check_branch
      %116 = sbr.rel (%p113) target = $region28
    $region27: #{agg0_forward.3} parent=5 // pred_region
      %s117 = ssub.s32 %s8, 1
      %p118 = scmp.lt.s32.totalorder %s13, 1
      %s119 = scalar_select %p118, %s13, 1
      %s120 = smul.addr %s119, 4
      %s121 = smul.addr %s120, 8
      %s122 = scalar_lea.vmem %s0, %s121
      %p123 = pneg %p34
      %p124 = pneg %p31
      %p125 = pneg %p55
      %p126 = pneg %p52
      %p127 = pneg %p81
      %p128 = pneg %p78
      %p129 = scmp.lt.s32.totalorder %s13, 1
      %s130 = scalar_select %p129, %s13, 1
      %s131 = smul.addr %s130, 4
      %s132 = smul.addr %s131, 8
      %s133 = scalar_lea.vmem %s2, %s132
      %p134 = scmp.lt.s32.totalorder %s13, 1
      %s135 = scalar_select %p134, %s13, 1
      %s136 = smul.addr %s135, 4
      %s137 = smul.addr %s136, 8
      %s138 = scalar_lea.vmem %s0, %s137
      %p139 = scmp.lt.s32.totalorder %s13, 1
      %s140 = scalar_select %p139, %s13, 1
      %s141 = smul.addr %s140, 4
      %s142 = smul.addr %s141, 8
      %s143 = scalar_lea.vmem %s2, %s142
      %v144 = vld [vmem:[%s138] sm:$0xff]
      %v145 = vld [vmem:[%s138 + $0x8] sm:$0xff]
      %v146 = vld [vmem:[%s138 + $0x10] sm:$0xff]
      %v147 = vld [vmem:[%s138 + $0x18] sm:$0xff]
      %v148 = vld [vmem:[%s1] sm:$0xff]
      %v149 = vld [vmem:[%s1 + $0x8] sm:$0xff]
      %v150 = vld [vmem:[%s1 + $0x10] sm:$0xff]
      %v151 = vld [vmem:[%s1 + $0x18] sm:$0xff]
      %153 = vset.pattern.permute.xlu0 0
      %154 = vperm.xlu0 %153, %v148
      %v155 = vpop.permute.xlu0 %154
      %158 = vset.pattern.permute.xlu0 0
      %159 = vperm.xlu0 %158, %v149
      %v160 = vpop.permute.xlu0 %159
      %163 = vset.pattern.permute.xlu0 0
      %164 = vperm.xlu0 %163, %v150
      %v165 = vpop.permute.xlu0 %164
      %168 = vset.pattern.permute.xlu0 0
      %169 = vperm.xlu0 %168, %v151
      %v170 = vpop.permute.xlu0 %169
      %v172 = vmul.f32 %v144, %v155
      %v173 = vmul.f32 %v145, %v160
      %v174 = vmul.f32 %v146, %v165
      %v175 = vmul.f32 %v147, %v170
      %176 = vset.pattern.permute.xlu0 1
      %177 = vperm.xlu0 %176, %v148
      %v178 = vpop.permute.xlu0 %177
      %180 = vset.pattern.permute.xlu0 1
      %181 = vperm.xlu0 %180, %v149
      %v182 = vpop.permute.xlu0 %181
      %184 = vset.pattern.permute.xlu0 1
      %185 = vperm.xlu0 %184, %v150
      %v186 = vpop.permute.xlu0 %185
      %188 = vset.pattern.permute.xlu0 1
      %189 = vperm.xlu0 %188, %v151
      %v190 = vpop.permute.xlu0 %189
      %v192 = vadd.f32 %v172, %v178
      %v193 = vadd.f32 %v173, %v182
      %v194 = vadd.f32 %v174, %v186
      %v195 = vadd.f32 %v175, %v190
      %v196 = vmul.f32 %v192, 0.5
      %v197 = vmul.f32 %v193, 0.5
      %v198 = vmul.f32 %v194, 0.5
      %v199 = vmul.f32 %v195, 0.5
      %v200 = vmul.f32 %v192, 0.70710677
      %v201 = vmul.f32 %v193, 0.70710677
      %v202 = vmul.f32 %v194, 0.70710677
      %v203 = vmul.f32 %v195, 0.70710677
      %v204 = verf.f32.pop %v200
      %v205 = verf.f32.pop %v201
      %v206 = verf.f32.pop %v202
      %v207 = verf.f32.pop %v203
      %v208 = vadd.f32 %v204, 1.0
      %v209 = vadd.f32 %v205, 1.0
      %v210 = vadd.f32 %v206, 1.0
      %v211 = vadd.f32 %v207, 1.0
      %v212 = vmul.f32 %v196, %v208
      %v213 = vmul.f32 %v197, %v209
      %v214 = vmul.f32 %v198, %v210
      %v215 = vmul.f32 %v199, %v211
      %vm216 = vcmask 130048
      %217 = vst.msk [vmem:[%s143] sm:$0xff] %vm216, %v212
      %218 = vst.msk [vmem:[%s143 + $0x8] sm:$0xff] %vm216, %v213
      %219 = vst.msk [vmem:[%s143 + $0x10] sm:$0xff] %vm216, %v214
      %220 = vst.msk [vmem:[%s143 + $0x18] sm:$0xff] %vm216, %v215
      %p221 = scmp.lt.s32.totalorder %s13, 1
      %s222 = scalar_select %p221, %s13, 1
      %s223 = smul.addr %s222, 4
      %s224 = smul.addr %s223, 8
      %s225 = scalar_lea.vmem %s2, %s224
      // Predicated region
      $region29: #{agg0_forward.3} parent=27 // pred_check
        %p226 = pneg %p78
      $region30: #{agg0_forward.3} parent=27 // pred_check_branch
        %228 = sbr.rel (%p226) target = $region32
      $region31: #{agg0_forward.3} parent=27 // pred_region
        _
      $region32: #{agg0_forward.3} parent=27 // pred_fallthru
        _
    $region28: #{agg0_forward.3} parent=5 // pred_fallthru
      _
    %p229 = scmp.le.s32.totalorder 2, %s8
    // Predicated region
    $region33: #{agg0_forward.3} parent=5 // pred_check
      %p230 = pneg %p229
    $region34: #{agg0_forward.3} parent=5 // pred_check_branch
      %232 = sbr.rel (%p230) target = $region36
    $region35: #{agg0_forward.3} parent=5 // pred_region
      %s233 = ssub.s32 %s8, 2
      // Predicated region
      $region37: #{agg0_forward.3} parent=35 // pred_check
        %p234 = pneg %p84
      $region38: #{agg0_forward.3} parent=35 // pred_check_branch
        %236 = sbr.rel (%p234) target = $region40
      $region39: #{agg0_forward.3} parent=35 // pred_region
        %p237 = scmp.lt.s32.totalorder %s14, 1
        %s238 = scalar_select %p237, %s14, 1
        %s239 = smul.addr %s238, 4
        %s240 = smul.addr %s239, 8
        %s241 = scalar_lea.vmem %s2, %s240
      $region40: #{agg0_forward.3} parent=35 // pred_fallthru
        _
    $region36: #{agg0_forward.3} parent=5 // pred_fallthru
      _
  $region6: #{agg0_forward.3} parent=0 // loop_footer
    %s12 = sadd.s32 1, %s8
  $region7: #{agg0_forward.3} parent=0 // loop_footer_branch
    %7 = sbr.rel target = $region3
  $region8: #{agg0_forward.3} parent=0 // loop_exit
    _

// kernel: agg0_forward.2
$region0: #{agg0_forward.2}
  #allocation0 [shape = 'u32[]', space=smem, size = 0x4, offset = 0x4, fixed_abs, tag = 'smem constant byte address 0x4 - core index']
  #allocation1 [shape = 'u32[144,128]{1,0:T(1,128)}', space=vmem, size = 0x12000, scoped, tag = 'internal scratch']
  %s0 = inlined_call_operand.vmem [shape: bf16[2,96,16], index: 0, kind: input, shape index: {}]
  %s1 = inlined_call_operand.vmem [shape: bf16[96,96], index: 1, kind: input, shape index: {}]
  %s2 = inlined_call_operand.vmem [shape: f32[2,32,16], index: 2, kind: output, shape index: {0}]
  %s3 = inlined_call_operand.vmem [shape: f32[2,32,2], index: 3, kind: output, shape index: {1}]
  %4 = xla_tuple %s2, %s3
  %s5 = sld [smem:[#allocation0]]
  $region49: #{agg0_forward.2} parent=0
    _
  %s7 = ssub.s32 1, %s5
  %s8 = scalar_select 0, %s7, %s5
  loop: start=0, step=1, limit=4
  $region2: #{agg0_forward.2} parent=0 // loop_pre_header
    _
  $region3: #{agg0_forward.2} parent=0 // loop_header
    %s10 = sphi 0, %s14
    %p11 = scmp.ge.s32.totalorder %s10, 4
    %s20 = sphi 0, %s22
    %s23 = sphi 0, %s20
    %s24 = sphi 0, %s23
    %s40 = sphi 0, %s24
    %s44 = sphi 0, %s44
    %s46 = sphi 0, %s44
    %s47 = sphi 0, %s46
    %s61 = sphi 0, %s47
    %s67 = sphi 0, %s69
    %s70 = sphi 0, %s67
    %s71 = sphi 0, %s70
    %s87 = sphi 0, %s71
    %s93 = sphi 0, %s95
    %s96 = sphi 0, %s93
    %s97 = sphi 0, %s96
    %s113 = sphi 0, %s97
  $region4: #{agg0_forward.2} parent=0 // loop_header_branch
    %13 = sbr.rel (%p11) target = $region8
  $region5: #{agg0_forward.2} parent=0 // loop_body
    %s15 = ssub.s32 %s10, 1
    %s16 = ssub.s32 %s10, 2
    %s17 = sadd.s32 %s10, 1
    %s18 = ssub.s32 %s10, %s17
    %p19 = scmp.eq.s32.totalorder %s18, 0
    %s21 = sadd.s32 %s20, 1
    %s22 = scalar_select %p19, %s20, %s21
    %p25 = pneg %p19
    %p26 = scmp.eq.s32.totalorder %s10, 1
    %p27 = por %p25, %p26
    %p28 = scmp.ne.s32.totalorder %s20, %s23
    %p29 = scmp.eq.s32.totalorder %s10, 0
    %p30 = por %p28, %p29
    %p31 = scmp.ne.s32.totalorder %s20, %s23
    %p32 = scmp.eq.s32.totalorder %s15, 1
    %p33 = por %p31, %p32
    %p34 = scmp.ne.s32.totalorder %s23, %s24
    %p35 = scmp.eq.s32.totalorder %s15, 0
    %p36 = por %p34, %p35
    %p37 = scmp.ne.s32.totalorder %s23, %s24
    %p38 = scmp.eq.s32.totalorder %s16, 1
    %p39 = por %p37, %p38
    %p41 = scmp.ne.s32.totalorder %s24, %s40
    %p42 = scmp.eq.s32.totalorder %s16, 0
    %p43 = por %p41, %p42
    %s45 = sadd.s32 %s44, 1
    %p48 = scmp.eq.s32.totalorder %s10, 1
    %p49 = scmp.ne.s32.totalorder %s44, %s46
    %p50 = scmp.eq.s32.totalorder %s10, 0
    %p51 = por %p49, %p50
    %p52 = scmp.ne.s32.totalorder %s44, %s46
    %p53 = scmp.eq.s32.totalorder %s15, 1
    %p54 = por %p52, %p53
    %p55 = scmp.ne.s32.totalorder %s46, %s47
    %p56 = scmp.eq.s32.totalorder %s15, 0
    %p57 = por %p55, %p56
    %p58 = scmp.ne.s32.totalorder %s46, %s47
    %p59 = scmp.eq.s32.totalorder %s16, 1
    %p60 = por %p58, %p59
    %p62 = scmp.ne.s32.totalorder %s47, %s61
    %p63 = scmp.eq.s32.totalorder %s16, 0
    %p64 = por %p62, %p63
    %s65 = ssub.s32 %s10, %s17
    %p66 = scmp.eq.s32.totalorder %s65, 0
    %s68 = sadd.s32 %s67, 1
    %s69 = scalar_select %p66, %s67, %s68
    %p72 = pneg %p66
    %p73 = scmp.eq.s32.totalorder %s10, 1
    %p74 = por %p72, %p73
    %p75 = scmp.ne.s32.totalorder %s67, %s70
    %p76 = scmp.eq.s32.totalorder %s10, 0
    %p77 = por %p75, %p76
    %p78 = scmp.ne.s32.totalorder %s67, %s70
    %p79 = scmp.eq.s32.totalorder %s15, 1
    %p80 = por %p78, %p79
    %p81 = scmp.ne.s32.totalorder %s70, %s71
    %p82 = scmp.eq.s32.totalorder %s15, 0
    %p83 = por %p81, %p82
    %p84 = scmp.ne.s32.totalorder %s70, %s71
    %p85 = scmp.eq.s32.totalorder %s16, 1
    %p86 = por %p84, %p85
    %p88 = scmp.ne.s32.totalorder %s71, %s87
    %p89 = scmp.eq.s32.totalorder %s16, 0
    %p90 = por %p88, %p89
    %s91 = ssub.s32 %s10, %s17
    %p92 = scmp.eq.s32.totalorder %s91, 0
    %s94 = sadd.s32 %s93, 1
    %s95 = scalar_select %p92, %s93, %s94
    %p98 = pneg %p92
    %p99 = scmp.eq.s32.totalorder %s10, 1
    %p100 = por %p98, %p99
    %p101 = scmp.ne.s32.totalorder %s93, %s96
    %p102 = scmp.eq.s32.totalorder %s10, 0
    %p103 = por %p101, %p102
    %p104 = scmp.ne.s32.totalorder %s93, %s96
    %p105 = scmp.eq.s32.totalorder %s15, 1
    %p106 = por %p104, %p105
    %p107 = scmp.ne.s32.totalorder %s96, %s97
    %p108 = scmp.eq.s32.totalorder %s15, 0
    %p109 = por %p107, %p108
    %p110 = scmp.ne.s32.totalorder %s96, %s97
    %p111 = scmp.eq.s32.totalorder %s16, 1
    %p112 = por %p110, %p111
    %p114 = scmp.ne.s32.totalorder %s97, %s113
    %p115 = scmp.eq.s32.totalorder %s16, 0
    %p116 = por %p114, %p115
    %p117 = scmp.le.s32.totalorder 1, %s10
    %p118 = scmp.lt.s32.totalorder %s10, 3
    %p119 = pnand %p117, %p118
    %p120 = pneg %p119
    // Predicated region
    $region9: #{agg0_forward.2} parent=5 // pred_check
      _
    $region10: #{agg0_forward.2} parent=5 // pred_check_branch
      %122 = sbr.rel (%p119) target = $region12
    $region11: #{agg0_forward.2} parent=5 // pred_region
      %s123 = ssub.s32 %s10, 1
      // Predicated region
      $region13: #{agg0_forward.2} parent=11 // pred_check
        %p124 = pneg %p57
      $region14: #{agg0_forward.2} parent=11 // pred_check_branch
        %126 = sbr.rel (%p124) target = $region16
      $region15: #{agg0_forward.2} parent=11 // pred_region
        _
      $region16: #{agg0_forward.2} parent=11 // pred_fallthru
        _
    $region12: #{agg0_forward.2} parent=5 // pred_fallthru
      _
    %p127 = scmp.lt.s32.totalorder %s10, 2
    // Predicated region
    $region17: #{agg0_forward.2} parent=5 // pred_check
      %p128 = pneg %p127
    $region18: #{agg0_forward.2} parent=5 // pred_check_branch
      %130 = sbr.rel (%p128) target = $region20
    $region19: #{agg0_forward.2} parent=5 // pred_region
      // Predicated region
      $region21: #{agg0_forward.2} parent=19 // pred_check
        %p131 = pneg %p30
      $region22: #{agg0_forward.2} parent=19 // pred_check_branch
        %133 = sbr.rel (%p131) target = $region24
      $region23: #{agg0_forward.2} parent=19 // pred_region
        %p134 = scmp.lt.s32.totalorder %s10, 1
        %s135 = scalar_select %p134, %s10, 1
        %s136 = smul.addr %s135, 12
        %s137 = smul.addr %s136, 4
        %s138 = scalar_lea.vmem %s0, %s137
      $region24: #{agg0_forward.2} parent=19 // pred_fallthru
        _
    $region20: #{agg0_forward.2} parent=5 // pred_fallthru
      _
    %p139 = scmp.le.s32.totalorder 1, %s10
    %p140 = scmp.lt.s32.totalorder %s10, 3
    %p141 = pnand %p139, %p140
    %p142 = pneg %p141
    // Predicated region
    $region25: #{agg0_forward.2} parent=5 // pred_check
      _
    $region26: #{agg0_forward.2} parent=5 // pred_check_branch
      %144 = sbr.rel (%p141) target = $region28
    $region27: #{agg0_forward.2} parent=5 // pred_region
      %s145 = ssub.s32 %s10, 1
      %p146 = scmp.lt.s32.totalorder %s15, 1
      %s147 = scalar_select %p146, %s15, 1
      %s148 = smul.addr %s147, 12
      %s149 = smul.addr %s148, 4
      %s150 = scalar_lea.vmem %s0, %s149
      %p151 = pneg %p36
      %p152 = pneg %p33
      %p153 = pneg %p57
      %p154 = pneg %p54
      %p155 = pneg %p83
      %p156 = pneg %p80
      %p157 = scmp.lt.s32.totalorder %s15, 1
      %s158 = scalar_select %p157, %s15, 1
      %s159 = smul.addr %s158, 4
      %s160 = smul.addr %s159, 8
      %s161 = scalar_lea.vmem %s2, %s160
      %p162 = pneg %p109
      %p163 = pneg %p106
      %p164 = scmp.lt.s32.totalorder %s15, 1
      %s165 = scalar_select %p164, %s15, 1
      %s166 = smul.addr %s165, 4
      %s167 = smul.addr %s166, 8
      %s168 = scalar_lea.vmem %s3, %s167
      %p169 = scmp.lt.s32.totalorder %s15, 1
      %s170 = scalar_select %p169, %s15, 1
      %s171 = smul.addr %s170, 12
      %s172 = smul.addr %s171, 4
      %s173 = scalar_lea.vmem %s0, %s172
      %p174 = scmp.lt.s32.totalorder %s15, 1
      %s175 = scalar_select %p174, %s15, 1
      %s176 = smul.addr %s175, 4
      %s177 = smul.addr %s176, 8
      %s178 = scalar_lea.vmem %s2, %s177
      %p179 = scmp.lt.s32.totalorder %s15, 1
      %s180 = scalar_select %p179, %s15, 1
      %s181 = smul.addr %s180, 4
      %s182 = smul.addr %s181, 8
      %s183 = scalar_lea.vmem %s3, %s182
      %v185 = vld [vmem:[%s173] sm:$0xf]
      %v186 = vld [vmem:[%s173 + $0x4] sm:$0xf]
      %v187 = vld [vmem:[%s173 + $0x8] sm:$0xf]
      %v188 = vld [vmem:[%s173 + $0xc] sm:$0xf]
      %v189 = vld [vmem:[%s173 + $0x10] sm:$0xf]
      %v190 = vld [vmem:[%s173 + $0x14] sm:$0xf]
      %v191 = vld [vmem:[%s173 + $0x18] sm:$0xf]
      %v192 = vld [vmem:[%s173 + $0x1c] sm:$0xf]
      %v193 = vld [vmem:[%s173 + $0x20] sm:$0xf]
      %v194 = vld [vmem:[%s173 + $0x24] sm:$0xf]
      %v195 = vld [vmem:[%s173 + $0x28] sm:$0xf]
      %v196 = vld [vmem:[%s173 + $0x2c] sm:$0xf]
      %v197 = vld [vmem:[%s1] sm:$0xf]
      %v198 = vld [vmem:[%s1 + $0x4] sm:$0xf]
      %v199 = vld [vmem:[%s1 + $0x8] sm:$0xf]
      %v200 = vld [vmem:[%s1 + $0xc] sm:$0xf]
      %v201 = vld [vmem:[%s1 + $0x10] sm:$0xf]
      %v202 = vld [vmem:[%s1 + $0x14] sm:$0xf]
      %v203 = vld [vmem:[%s1 + $0x18] sm:$0xf]
      %v204 = vld [vmem:[%s1 + $0x1c] sm:$0xf]
      %v205 = vld [vmem:[%s1 + $0x20] sm:$0xf]
      %v206 = vld [vmem:[%s1 + $0x24] sm:$0xf]
      %v207 = vld [vmem:[%s1 + $0x28] sm:$0xf]
      %v208 = vld [vmem:[%s1 + $0x2c] sm:$0xf]
      %v221 = vunpack.c.l.b16 %v197
      %v222 = vunpack.c.l.b16 %v198
      %v223 = vunpack.c.l.b16 %v199
      %v224 = vunpack.c.l.b16 %v200
      %v225 = vunpack.c.l.b16 %v201
      %v226 = vunpack.c.l.b16 %v202
      %v227 = vunpack.c.l.b16 %v203
      %v228 = vunpack.c.l.b16 %v204
      %v229 = vunpack.c.l.b16 %v205
      %v230 = vunpack.c.l.b16 %v206
      %v231 = vunpack.c.l.b16 %v207
      %v232 = vunpack.c.l.b16 %v208
      %v233 = vpack.c.b16 %v222, %v221
      %v234 = vpack.c.b16 %v224, %v223
      %v235 = vpack.c.b16 %v226, %v225
      %v236 = vpack.c.b16 %v228, %v227
      %v237 = vpack.c.b16 %v230, %v229
      %v238 = vpack.c.b16 %v232, %v231
      %v251 = vunpack.c.l.b16 %v185
      %v252 = vunpack.c.l.b16 %v186
      %v253 = vunpack.c.l.b16 %v187
      %v254 = vunpack.c.l.b16 %v188
      %v255 = vunpack.c.l.b16 %v189
      %v256 = vunpack.c.l.b16 %v190
      %v257 = vunpack.c.l.b16 %v191
      %v258 = vunpack.c.l.b16 %v192
      %v259 = vunpack.c.l.b16 %v193
      %v260 = vunpack.c.l.b16 %v194
      %v261 = vunpack.c.l.b16 %v195
      %v262 = vunpack.c.l.b16 %v196
      %v263 = vpack.c.b16 %v252, %v251
      %v264 = vpack.c.b16 %v254, %v253
      %v265 = vpack.c.b16 %v256, %v255
      %v266 = vpack.c.b16 %v258, %v257
      %v267 = vpack.c.b16 %v260, %v259
      %v268 = vpack.c.b16 %v262, %v261
      %vm275 = vcmask 785408
      %v277 = vsel %vm275, %v233, 0
      %v280 = vsel %vm275, %v234, 0
      %v283 = vsel %vm275, %v235, 0
      %v286 = vsel %vm275, %v236, 0
      %v289 = vsel %vm275, %v237, 0
      %v292 = vsel %vm275, %v238, 0
      %294 = vmatprep.subr.bf16.mxu0 0
      %295 = vmatpush1.bf16.msra.mxu0 %v263
      %296 = vmatprep.subr.bf16.mxu0 0
      %297 = vmatpush1.bf16.msra.mxu0 %v264
      %298 = vmatprep.subr.bf16.mxu0 0
      %299 = vmatpush1.bf16.msra.mxu0 %v265
      %300 = vmatprep.subr.bf16.mxu0 0
      %301 = vmatpush1.bf16.msra.mxu0 %v266
      %302 = vmatprep.subr.bf16.mxu0 0
      %303 = vmatpush1.bf16.msra.mxu0 %v267
      %304 = vmatprep.subr.bf16.mxu0 0
      %305 = vmatpush1.bf16.msra.mxu0 %v268
      %306 = vmatprep.subr.bf16.mxu0 0
      %307 = vmatpush1.bf16.msra.mxu0 0
      %308 = vmatprep.subr.bf16.mxu0 0
      %309 = vmatpush1.bf16.msra.mxu0 0
      %310 = vmatprep.subr.bf16.mxu0 0
      %311 = vmatpush1.bf16.msra.mxu0 0
      %312 = vmatprep.subr.bf16.mxu0 0
      %313 = vmatpush1.bf16.msra.mxu0 0
      %314 = vmatprep.subr.bf16.mxu0 0
      %315 = vmatpush1.bf16.msra.mxu0 0
      %316 = vmatprep.subr.bf16.mxu0 0
      %317 = vmatpush1.bf16.msra.mxu0 0
      %318 = vmatprep.subr.bf16.mxu0 0
      %319 = vmatpush1.bf16.msra.mxu0 0
      %320 = vmatprep.subr.bf16.mxu0 0
      %321 = vmatpush1.bf16.msra.mxu0 0
      %322 = vmatprep.subr.bf16.mxu0 0
      %323 = vmatpush1.bf16.msra.mxu0 0
      %324 = vmatprep.subr.bf16.mxu0 0
      %325 = vmatpush1.bf16.msra.mxu0 0
      %326 = vmatprep.mubr.bf16.mxu0 0
      %327 = vmatmul.mubr.bf16.gmra.mrb[0].mxu0 %v277
      %v328 = vpop.f32.mrb[0].mxu0
      %v329 = vadd.f32 0.0, %v328
      %v330 = vpop.f32.mrb[0].mxu0
      %v331 = vpop.f32.mrb[0].mxu0
      %v332 = vadd.f32 0.0, %v331
      %v333 = vpop.f32.mrb[0].mxu0
      %334 = vmatprep.mubr.bf16.mxu0 0
      %335 = vmatmul.mubr.bf16.gmra.mrb[0].mxu0 %v280
      %v336 = vpop.f32.mrb[0].mxu0
      %v337 = vadd.f32 0.0, %v336
      %v338 = vpop.f32.mrb[0].mxu0
      %v339 = vpop.f32.mrb[0].mxu0
      %v340 = vadd.f32 0.0, %v339
      %v341 = vpop.f32.mrb[0].mxu0
      %342 = vmatprep.mubr.bf16.mxu0 0
      %343 = vmatmul.mubr.bf16.gmra.mrb[0].mxu0 %v283
      %v344 = vpop.f32.mrb[0].mxu0
      %v345 = vadd.f32 0.0, %v344
      %v346 = vpop.f32.mrb[0].mxu0
      %v347 = vpop.f32.mrb[0].mxu0
      %v348 = vadd.f32 0.0, %v347
      %v349 = vpop.f32.mrb[0].mxu0
      %350 = vmatprep.mubr.bf16.mxu0 0
      %351 = vmatmul.mubr.bf16.gmra.mrb[0].mxu0 %v286
      %v352 = vpop.f32.mrb[0].mxu0
      %v353 = vadd.f32 0.0, %v352
      %v354 = vpop.f32.mrb[0].mxu0
      %v355 = vpop.f32.mrb[0].mxu0
      %v356 = vadd.f32 0.0, %v355
      %v357 = vpop.f32.mrb[0].mxu0
      %358 = vmatprep.mubr.bf16.mxu0 0
      %359 = vmatmul.mubr.bf16.gmra.mrb[0].mxu0 %v289
      %v360 = vpop.f32.mrb[0].mxu0
      %v361 = vadd.f32 0.0, %v360
      %v362 = vpop.f32.mrb[0].mxu0
      %v363 = vpop.f32.mrb[0].mxu0
      %v364 = vadd.f32 0.0, %v363
      %v365 = vpop.f32.mrb[0].mxu0
      %366 = vmatprep.mubr.bf16.mxu0 0
      %367 = vmatmul.mubr.bf16.gmra.mrb[0].mxu0 %v292
      %v368 = vpop.f32.mrb[0].mxu0
      %v369 = vadd.f32 0.0, %v368
      %v370 = vpop.f32.mrb[0].mxu0
      %v371 = vpop.f32.mrb[0].mxu0
      %v372 = vadd.f32 0.0, %v371
      %v373 = vpop.f32.mrb[0].mxu0
      %374 = vdwg.mxu0
      %vm375 = vcmask 1047680
      %376 = vrot.lane.b32.xlu0 %v329, 16
      %v377 = vpop.permute.xlu0 %376
      %v378 = vsel %vm375, %v377, %v329
      %379 = vrot.lane.b32.xlu0 %v332, 16
      %v380 = vpop.permute.xlu0 %379
      %v381 = vsel %vm375, %v380, %v332
      %382 = vrot.lane.b32.xlu0 %v337, 16
      %v383 = vpop.permute.xlu0 %382
      %v384 = vsel %vm375, %v383, %v337
      %385 = vrot.lane.b32.xlu0 %v340, 16
      %v386 = vpop.permute.xlu0 %385
      %v387 = vsel %vm375, %v386, %v340
      %388 = vrot.lane.b32.xlu0 %v378, 16
      %v389 = vpop.permute.xlu0 %388
      %390 = vrot.lane.b32.xlu0 %v381, 16
      %v391 = vpop.permute.xlu0 %390
      %392 = vrot.lane.b32.xlu0 %v384, 16
      %v393 = vpop.permute.xlu0 %392
      %394 = vrot.lane.b32.xlu0 %v387, 16
      %v395 = vpop.permute.xlu0 %394
      %v396 = vsel %vm375, %v389, %v329
      %v397 = vsel %vm375, %v391, %v332
      %v398 = vsel %vm375, %v393, %v337
      %v399 = vsel %vm375, %v395, %v340
      %400 = vrot.lane.b32.xlu0 %v361, 16
      %v401 = vpop.permute.xlu0 %400
      %v402 = vsel %vm375, %v401, %v361
      %403 = vrot.lane.b32.xlu0 %v364, 16
      %v404 = vpop.permute.xlu0 %403
      %v405 = vsel %vm375, %v404, %v364
      %406 = vrot.lane.b32.xlu0 %v369, 16
      %v407 = vpop.permute.xlu0 %406
      %v408 = vsel %vm375, %v407, %v369
      %409 = vrot.lane.b32.xlu0 %v372, 16
      %v410 = vpop.permute.xlu0 %409
      %v411 = vsel %vm375, %v410, %v372
      %412 = vrot.lane.b32.xlu0 %v402, 16
      %v413 = vpop.permute.xlu0 %412
      %414 = vrot.lane.b32.xlu0 %v405, 16
      %v415 = vpop.permute.xlu0 %414
      %416 = vrot.lane.b32.xlu0 %v408, 16
      %v417 = vpop.permute.xlu0 %416
      %418 = vrot.lane.b32.xlu0 %v411, 16
      %v419 = vpop.permute.xlu0 %418
      %v420 = vsel %vm375, %v413, %v361
      %v421 = vsel %vm375, %v415, %v364
      %v422 = vsel %vm375, %v417, %v369
      %v423 = vsel %vm375, %v419, %v372
      %v424 = vlaneseq
      %v425 = vand.u32 %v424, 127
      %vm426 = vcmp.gt.s32.totalorder %v425, 0
      %v427 = vsel %vm426, 1, 0
      %v428 = vcvt.s32.f32 %v427
      %vm429 = vcmp.lt.s32.totalorder %v425, 15
      %v430 = vsel %vm429, 1, 0
      %v431 = vcvt.s32.f32 %v430
      %433 = vrot.lane.b32.xlu0 %v428, 15
      %v434 = vpop.permute.xlu0 %433
      %v436 = vmul.f32 %v396, %v434
      %v437 = vmul.f32 %v397, %v434
      %v438 = vmul.f32 %v398, %v434
      %v439 = vmul.f32 %v399, %v434
      %444 = vrot.lane.b32.xlu0 %v436, 113
      %v445 = vpop.permute.xlu0 %444
      %446 = vrot.lane.b32.xlu0 %v437, 113
      %v447 = vpop.permute.xlu0 %446
      %448 = vrot.lane.b32.xlu0 %v438, 113
      %v449 = vpop.permute.xlu0 %448
      %450 = vrot.lane.b32.xlu0 %v439, 113
      %v451 = vpop.permute.xlu0 %450
      %v456 = vadd.f32 %v345, %v445
      %v457 = vadd.f32 %v348, %v447
      %v458 = vadd.f32 %v353, %v449
      %v459 = vadd.f32 %v356, %v451
      %461 = vrot.lane.b32.xlu0 %v431, 1
      %v462 = vpop.permute.xlu0 %461
      %v464 = vmul.f32 %v420, %v462
      %v465 = vmul.f32 %v421, %v462
      %v466 = vmul.f32 %v422, %v462
      %v467 = vmul.f32 %v423, %v462
      %472 = vrot.lane.b32.xlu0 %v464, 127
      %v473 = vpop.permute.xlu0 %472
      %474 = vrot.lane.b32.xlu0 %v465, 127
      %v475 = vpop.permute.xlu0 %474
      %476 = vrot.lane.b32.xlu0 %v466, 127
      %v477 = vpop.permute.xlu0 %476
      %478 = vrot.lane.b32.xlu0 %v467, 127
      %v479 = vpop.permute.xlu0 %478
      %v484 = vadd.f32 %v456, %v473
      %v485 = vadd.f32 %v457, %v475
      %v486 = vadd.f32 %v458, %v477
      %v487 = vadd.f32 %v459, %v479
      %vm488 = vcmask 130048
      %489 = vst.msk [vmem:[%s178] sm:$0xff] %vm488, %v484
      %490 = vst.msk [vmem:[%s178 + $0x8] sm:$0xff] %vm488, %v485
      %491 = vst.msk [vmem:[%s178 + $0x10] sm:$0xff] %vm488, %v486
      %492 = vst.msk [vmem:[%s178 + $0x18] sm:$0xff] %vm488, %v487
      %v493 = vsel %vm488, %v484, 0.0
      %494 = vadd.xlane.f32.xlu0 %v493
      %v495 = vpop.xlane.xlu0 %494
      %v496 = vsel %vm488, %v485, 0.0
      %497 = vadd.xlane.f32.xlu0 %v496
      %v498 = vpop.xlane.xlu0 %497
      %v499 = vsel %vm488, %v486, 0.0
      %500 = vadd.xlane.f32.xlu0 %v499
      %v501 = vpop.xlane.xlu0 %500
      %v502 = vsel %vm488, %v487, 0.0
      %503 = vadd.xlane.f32.xlu0 %v502
      %v504 = vpop.xlane.xlu0 %503
      %v505 = vmul.f32 %v484, %v484
      %v506 = vmul.f32 %v485, %v485
      %v507 = vmul.f32 %v486, %v486
      %v508 = vmul.f32 %v487, %v487
      %v509 = vsel %vm488, %v505, 0.0
      %510 = vadd.xlane.f32.xlu0 %v509
      %v511 = vpop.xlane.xlu0 %510
      %v512 = vsel %vm488, %v506, 0.0
      %513 = vadd.xlane.f32.xlu0 %v512
      %v514 = vpop.xlane.xlu0 %513
      %v515 = vsel %vm488, %v507, 0.0
      %516 = vadd.xlane.f32.xlu0 %v515
      %v517 = vpop.xlane.xlu0 %516
      %v518 = vsel %vm488, %v508, 0.0
      %519 = vadd.xlane.f32.xlu0 %v518
      %v520 = vpop.xlane.xlu0 %519
      %vm521 = vcmask 7168
      %v522 = vsel %vm521, %v495, %v511
      %v523 = vsel %vm521, %v498, %v514
      %v524 = vsel %vm521, %v501, %v517
      %v525 = vsel %vm521, %v504, %v520
      %vm526 = vcmask 15360
      %527 = vst.msk [vmem:[%s183] sm:$0xff] %vm526, %v522
      %528 = vst.msk [vmem:[%s183 + $0x8] sm:$0xff] %vm526, %v523
      %529 = vst.msk [vmem:[%s183 + $0x10] sm:$0xff] %vm526, %v524
      %530 = vst.msk [vmem:[%s183 + $0x18] sm:$0xff] %vm526, %v525
      %p531 = scmp.lt.s32.totalorder %s15, 1
      %s532 = scalar_select %p531, %s15, 1
      %s533 = smul.addr %s532, 4
      %s534 = smul.addr %s533, 8
      %s535 = scalar_lea.vmem %s2, %s534
      %p536 = scmp.lt.s32.totalorder %s15, 1
      %s537 = scalar_select %p536, %s15, 1
      %s538 = smul.addr %s537, 4
      %s539 = smul.addr %s538, 8
      %s540 = scalar_lea.vmem %s3, %s539
      // Predicated region
      $region29: #{agg0_forward.2} parent=27 // pred_check
        %p541 = pneg %p80
      $region30: #{agg0_forward.2} parent=27 // pred_check_branch
        %543 = sbr.rel (%p541) target = $region32
      $region31: #{agg0_forward.2} parent=27 // pred_region
        _
      $region32: #{agg0_forward.2} parent=27 // pred_fallthru
        _
      // Predicated region
      $region33: #{agg0_forward.2} parent=27 // pred_check
        %p544 = pneg %p106
      $region34: #{agg0_forward.2} parent=27 // pred_check_branch
        %546 = sbr.rel (%p544) target = $region36
      $region35: #{agg0_forward.2} parent=27 // pred_region
        _
      $region36: #{agg0_forward.2} parent=27 // pred_fallthru
        _
    $region28: #{agg0_forward.2} parent=5 // pred_fallthru
      _
    %p547 = scmp.le.s32.totalorder 2, %s10
    // Predicated region
    $region37: #{agg0_forward.2} parent=5 // pred_check
      %p548 = pneg %p547
    $region38: #{agg0_forward.2} parent=5 // pred_check_branch
      %550 = sbr.rel (%p548) target = $region40
    $region39: #{agg0_forward.2} parent=5 // pred_region
      %s551 = ssub.s32 %s10, 2
      // Predicated region
      $region41: #{agg0_forward.2} parent=39 // pred_check
        %p552 = pneg %p86
      $region42: #{agg0_forward.2} parent=39 // pred_check_branch
        %554 = sbr.rel (%p552) target = $region44
      $region43: #{agg0_forward.2} parent=39 // pred_region
        %p555 = scmp.lt.s32.totalorder %s16, 1
        %s556 = scalar_select %p555, %s16, 1
        %s557 = smul.addr %s556, 4
        %s558 = smul.addr %s557, 8
        %s559 = scalar_lea.vmem %s2, %s558
      $region44: #{agg0_forward.2} parent=39 // pred_fallthru
        _
      // Predicated region
      $region45: #{agg0_forward.2} parent=39 // pred_check
        %p560 = pneg %p112
      $region46: #{agg0_forward.2} parent=39 // pred_check_branch
        %562 = sbr.rel (%p560) target = $region48
      $region47: #{agg0_forward.2} parent=39 // pred_region
        %p563 = scmp.lt.s32.totalorder %s16, 1
        %s564 = scalar_select %p563, %s16, 1
        %s565 = smul.addr %s564, 4
        %s566 = smul.addr %s565, 8
        %s567 = scalar_lea.vmem %s3, %s566
      $region48: #{agg0_forward.2} parent=39 // pred_fallthru
        _
    $region40: #{agg0_forward.2} parent=5 // pred_fallthru
      _
  $region6: #{agg0_forward.2} parent=0 // loop_footer
    %s14 = sadd.s32 1, %s10
  $region7: #{agg0_forward.2} parent=0 // loop_footer_branch
    %9 = sbr.rel target = $region3
  $region8: #{agg0_forward.2} parent=0 // loop_exit
    _

</llo_original>
